<compile_context>
chip_gen: v6e
topology: v6e:2x2x1
jax: 0.10.0
libtpu: 0.0.40
codegen_flags: <defaults>
</compile_context>

<pallas_src>
import jax
import jax.numpy as jnp
from jax.experimental import pallas as pl
from jax.experimental.pallas import tpu as pltpu


def _spatial_attention_impl(x, w1, w2, w3, bs, vs):
    """x: (B, N, F, T); w1: (T,); w2: (F, T); w3: (F,); bs: (1, N, N); vs: (N, N)."""
    B, N, F, T = x.shape
    dt = x.dtype

    # Lane-dense input layout: x_flat[b*N + n, f*T + t] = x[b, n, f, t].
    x_flat = x.reshape(B * N, F * T)

    # Fold W1 and W2 into a single matrix:
    #   w_l[f*T + t, t'] = w1[t] * w2[f, t']   so  x_flat @ w_l == (x @ W1) @ W2
    w_l = (w2[:, None, :] * w1[None, :, None]).reshape(F * T, T)
    # W3 contraction as a matrix:
    #   w_r[f*T + t, t'] = w3[f] * (t == t')   so  x_flat @ w_r == W3 @ x
    w_r = (w3[:, None, None] * jnp.eye(T, dtype=dt)[None, :, :]).reshape(F * T, T)
    # One fused weight -> mat_l and mat_r come from a single MXU dot inside the kernel.
    w_lr = jnp.concatenate([w_l, w_r], axis=1).astype(dt)            # (F*T, 2T)

    # Stack bias + Vs into one operand to cut prologue DMA count.
    bsvs = jnp.stack([bs.reshape(N, N), vs], axis=0).astype(dt)      # (2, N, N)

    def kernel(xf_ref, wlr_ref, bsvs_ref, out_ref):
        xf = xf_ref[...]                                             # (B*N, F*T)

        # [mat_l | mat_r] in one dot: (B*N, 2T).
        lr = jnp.dot(xf, wlr_ref[...], preferred_element_type=jnp.float32)

        bs_t = bsvs_ref[0]                                           # (N, N)
        vs_t = bsvs_ref[1]                                           # (N, N)

        # Per-batch dot product + bias + sigmoid, kept entirely in vregs and packed
        # side by side along lanes.  B is tiny and static -> fully unrolled.
        sig_blocks = []
        for b in range(B):
            ml = lr[b * N:(b + 1) * N, :T]                           # (N, T)
            mr = lr[b * N:(b + 1) * N, T:]                           # (N, T)
            dp = jax.lax.dot_general(
                ml, mr, (((1,), (1,)), ((), ())),
                preferred_element_type=jnp.float32)                  # (N, N)
            sig_blocks.append(jax.nn.sigmoid(dp + bs_t))
        sig = jnp.concatenate(sig_blocks, axis=1)                    # (N, B*N)

        # S_att for all batches at once: (N, N) @ (N, B*N).
        s_att = jnp.dot(vs_t, sig, preferred_element_type=jnp.float32)

        # softmax over dim=1 of (B, N, N) == axis 0 of each column; batches occupy
        # disjoint lane ranges so one axis-0 reduce covers all of them.
        m = jnp.max(s_att, axis=0, keepdims=True)
        e = jnp.exp(s_att - m)
        norm = e / jnp.sum(e, axis=0, keepdims=True)                 # exact normalization

        # Emit (B, N, N) directly -> no wrapper-side relayout kernel.
        for b in range(B):
            out_ref[b, :, :] = norm[:, b * N:(b + 1) * N].astype(out_ref.dtype)

    return pl.pallas_call(
        kernel,
        out_shape=jax.ShapeDtypeStruct((B, N, N), dt),
        in_specs=[
            pl.BlockSpec(memory_space=pltpu.MemorySpace.VMEM),
            pl.BlockSpec(memory_space=pltpu.MemorySpace.VMEM),
            pl.BlockSpec(memory_space=pltpu.MemorySpace.VMEM),
        ],
        out_specs=pl.BlockSpec(memory_space=pltpu.MemorySpace.VMEM),
    )(x_flat, w_lr, bsvs)


spatial_attention = jax.jit(_spatial_attention_impl)


def reference(x, w1, w2, w3, bs, vs):
    """Pure-JAX reference mirroring the PyTorch forward exactly."""
    mat_l = jnp.einsum('bnft,t->bnf', x, w1)
    mat_l = jnp.einsum('bnf,ft->bnt', mat_l, w2)
    mat_r = jnp.einsum('f,bnft->bnt', w3, x)          # (B, N, T); transpose folded below
    dp = jnp.einsum('bnt,bmt->bnm', mat_l, mat_r)     # (B, N, N)
    s = jax.nn.sigmoid(dp + bs)                       # bs broadcasts (1, N, N)
    s_att = jnp.einsum('nm,bmk->bnk', vs, s)          # Vs @ sigmoid(...)
    return jax.nn.softmax(s_att, axis=1)


if __name__ == "__main__":
    B, N, F_in, T = 2, 16, 4, 8

    key = jax.random.PRNGKey(0)
    kx, k1, k2, k3, kb, kv = jax.random.split(key, 6)

    x = jax.random.normal(kx, (B, N, F_in, T), dtype=jnp.float32)
    # Deterministic parameter init (the PyTorch module leaves them uninitialized).
    w1 = 0.1 * jax.random.normal(k1, (T,), dtype=jnp.float32)
    w2 = 0.1 * jax.random.normal(k2, (F_in, T), dtype=jnp.float32)
    w3 = 0.1 * jax.random.normal(k3, (F_in,), dtype=jnp.float32)
    bs = 0.1 * jax.random.normal(kb, (1, N, N), dtype=jnp.float32)
    vs = 0.1 * jax.random.normal(kv, (N, N), dtype=jnp.float32)

    out = spatial_attention(x, w1, w2, w3, bs, vs)
    out = jax.block_until_ready(out)

    ref = reference(x, w1, w2, w3, bs, vs)
    assert out.shape == (B, N, N)
    assert jnp.allclose(out, ref, atol=1e-5, rtol=1e-5), "mismatch vs reference"

    print("KERNEL_OK")
</pallas_src>

<mosaic_0001>
module attributes {stable_mosaic.version = 11 : i64} {
  func.func @kernel(%arg0: memref<32x32xf32, #tpu.memory_space<vmem>>, %arg1: memref<32x16xf32, #tpu.memory_space<vmem>>, %arg2: memref<2x16x16xf32, #tpu.memory_space<vmem>>, %arg3: memref<2x16x16xf32, #tpu.memory_space<vmem>>) attributes {dimension_semantics = [], scalar_prefetch = 0 : i64, scratch_operands = 0 : i64, tpu.core_type = #tpu.core_type<tc>} {
    %c0 = arith.constant 0 : index
    %c0_0 = arith.constant 0 : index
    %0 = vector.load %arg0[%c0, %c0_0] : memref<32x32xf32, #tpu.memory_space<vmem>>, vector<32x32xf32>
    %c0_1 = arith.constant 0 : index
    %c0_2 = arith.constant 0 : index
    %1 = vector.load %arg1[%c0_1, %c0_2] : memref<32x16xf32, #tpu.memory_space<vmem>>, vector<32x16xf32>
    %cst = arith.constant dense<0.000000e+00> : vector<32x16xf32>
    %2 = tpu.matmul %0, %1, %cst {dimension_numbers = #tpu.dot_dimension_numbers<[1], [0], [0], [1], [0, 0, 1, 1], [], []>} : vector<32x32xf32>, vector<32x16xf32>, vector<32x16xf32> -> vector<32x16xf32>
    %c0_3 = arith.constant 0 : index
    %c0_4 = arith.constant 0 : index
    %c0_5 = arith.constant 0 : index
    %3 = vector.load %arg2[%c0_3, %c0_4, %c0_5] : memref<2x16x16xf32, #tpu.memory_space<vmem>>, vector<1x16x16xf32>
    %4 = vector.shape_cast %3 : vector<1x16x16xf32> to vector<16x16xf32>
    %c1 = arith.constant 1 : index
    %c0_6 = arith.constant 0 : index
    %c0_7 = arith.constant 0 : index
    %5 = vector.load %arg2[%c1, %c0_6, %c0_7] : memref<2x16x16xf32, #tpu.memory_space<vmem>>, vector<1x16x16xf32>
    %6 = vector.shape_cast %5 : vector<1x16x16xf32> to vector<16x16xf32>
    %7 = vector.extract_strided_slice %2 {offsets = [0, 0], sizes = [16, 8], strides = [1, 1]} : vector<32x16xf32> to vector<16x8xf32>
    %8 = vector.extract_strided_slice %2 {offsets = [0, 8], sizes = [16, 8], strides = [1, 1]} : vector<32x16xf32> to vector<16x8xf32>
    %cst_8 = arith.constant dense<0.000000e+00> : vector<16x16xf32>
    %9 = tpu.matmul %7, %8, %cst_8 {dimension_numbers = #tpu.dot_dimension_numbers<[1], [1], [0], [0], [0, 0, 1, 0], [], []>} : vector<16x8xf32>, vector<16x8xf32>, vector<16x16xf32> -> vector<16x16xf32>
    %10 = arith.addf %9, %4 : vector<16x16xf32>
    %11 = arith.negf %10 : vector<16x16xf32>
    %12 = math.exp %11 : vector<16x16xf32>
    %cst_9 = arith.constant 1.000000e+00 : f32
    %13 = vector.broadcast %cst_9 : f32 to vector<16x16xf32>
    %14 = arith.addf %13, %12 : vector<16x16xf32>
    %15 = arith.divf %13, %14 : vector<16x16xf32>
    %16 = vector.extract_strided_slice %2 {offsets = [16, 0], sizes = [16, 8], strides = [1, 1]} : vector<32x16xf32> to vector<16x8xf32>
    %17 = vector.extract_strided_slice %2 {offsets = [16, 8], sizes = [16, 8], strides = [1, 1]} : vector<32x16xf32> to vector<16x8xf32>
    %cst_10 = arith.constant dense<0.000000e+00> : vector<16x16xf32>
    %18 = tpu.matmul %16, %17, %cst_10 {dimension_numbers = #tpu.dot_dimension_numbers<[1], [1], [0], [0], [0, 0, 1, 0], [], []>} : vector<16x8xf32>, vector<16x8xf32>, vector<16x16xf32> -> vector<16x16xf32>
    %19 = arith.addf %18, %4 : vector<16x16xf32>
    %20 = arith.negf %19 : vector<16x16xf32>
    %21 = math.exp %20 : vector<16x16xf32>
    %cst_11 = arith.constant 1.000000e+00 : f32
    %22 = vector.broadcast %cst_11 : f32 to vector<16x16xf32>
    %23 = arith.addf %22, %21 : vector<16x16xf32>
    %24 = arith.divf %22, %23 : vector<16x16xf32>
    %25 = tpu.concatenate %15, %24 in 1 : vector<16x16xf32>, vector<16x16xf32> -> vector<16x32xf32>
    %cst_12 = arith.constant dense<0.000000e+00> : vector<16x32xf32>
    %26 = tpu.matmul %6, %25, %cst_12 {dimension_numbers = #tpu.dot_dimension_numbers<[1], [0], [0], [1], [0, 0, 1, 1], [], []>} : vector<16x16xf32>, vector<16x32xf32>, vector<16x32xf32> -> vector<16x32xf32>
    %cst_13 = arith.constant dense<0xFF800000> : vector<32xf32>
    %27 = vector.multi_reduction <maximumf>, %26, %cst_13 [0] : vector<16x32xf32> to vector<32xf32>
    %28 = vector.shape_cast %27 : vector<32xf32> to vector<1x32xf32>
    %29 = vector.broadcast %28 : vector<1x32xf32> to vector<16x32xf32>
    %30 = arith.subf %26, %29 : vector<16x32xf32>
    %31 = math.exp %30 : vector<16x32xf32>
    %cst_14 = arith.constant dense<0.000000e+00> : vector<32xf32>
    %32 = vector.multi_reduction <add>, %31, %cst_14 [0] : vector<16x32xf32> to vector<32xf32>
    %33 = vector.shape_cast %32 : vector<32xf32> to vector<1x32xf32>
    %34 = vector.broadcast %33 : vector<1x32xf32> to vector<16x32xf32>
    %35 = arith.divf %31, %34 : vector<16x32xf32>
    %36 = vector.extract_strided_slice %35 {offsets = [0, 0], sizes = [16, 16], strides = [1, 1]} : vector<16x32xf32> to vector<16x16xf32>
    %c0_15 = arith.constant 0 : index
    %c0_16 = arith.constant 0 : index
    %c0_17 = arith.constant 0 : index
    %37 = vector.load %arg3[%c0_15, %c0_16, %c0_17] : memref<2x16x16xf32, #tpu.memory_space<vmem>>, vector<1x16x16xf32>
    %38 = vector.shape_cast %37 : vector<1x16x16xf32> to vector<16x16xf32>
    %39 = vector.shape_cast %36 : vector<16x16xf32> to vector<1x16x16xf32>
    tpu.vector_store %arg3[%c0_15, %c0_16, %c0_17], %39 {strides = array<i32>} : memref<2x16x16xf32, #tpu.memory_space<vmem>>, vector<1x16x16xf32>,
    %40 = vector.extract_strided_slice %35 {offsets = [0, 16], sizes = [16, 16], strides = [1, 1]} : vector<16x32xf32> to vector<16x16xf32>
    %c1_18 = arith.constant 1 : index
    %c0_19 = arith.constant 0 : index
    %c0_20 = arith.constant 0 : index
    %41 = vector.load %arg3[%c1_18, %c0_19, %c0_20] : memref<2x16x16xf32, #tpu.memory_space<vmem>>, vector<1x16x16xf32>
    %42 = vector.shape_cast %41 : vector<1x16x16xf32> to vector<16x16xf32>
    %43 = vector.shape_cast %40 : vector<16x16xf32> to vector<1x16x16xf32>
    tpu.vector_store %arg3[%c1_18, %c0_19, %c0_20], %43 {strides = array<i32>} : memref<2x16x16xf32, #tpu.memory_space<vmem>>, vector<1x16x16xf32>,
    return
  }
}

</mosaic_0001>

<llo_original>
// kernel: _spatial_attention_impl.1
$region0: #{_spatial_attention_impl.1}
  #allocation0 [shape = 'u32[]', space=smem, size = 0x4, offset = 0x4, fixed_abs, tag = 'smem constant byte address 0x4 - core index']
  #allocation1 [shape = 'u32[144,128]{1,0:T(1,128)}', space=vmem, size = 0x12000, scoped, tag = 'internal scratch']
  %s0 = inlined_call_operand.vmem [shape: f32[32,32], index: 0, kind: input, shape index: {}]
  %s1 = inlined_call_operand.vmem [shape: f32[32,16], index: 1, kind: input, shape index: {}]
  %s2 = inlined_call_operand.vmem [shape: f32[2,16,16], index: 2, kind: input, shape index: {}]
  %s3 = inlined_call_operand.hbm [shape: f32[2,16,16], index: 3, kind: output, shape index: {}]
  %s4 = sld [smem:[#allocation0]]
  $region22: #{_spatial_attention_impl.1} parent=0
    _
  %s6 = ssub.s32 1, %s4
  %s7 = scalar_select 0, %s6, %s4
  $region1: #{_spatial_attention_impl.1} parent=0
    #allocation2 [shape = 'u8[16384]{0}', space=vmem, size = 0x4000, scoped, tag = 'output window, operand 0, single buffered']
    #allocation3 [shape = 's32[1]{0}', space=sflag, size = 0x4, scoped, tag = 'scoped memory for _spatial_attention_impl.1']
    %8 = vsyncpa [#allocation3], 0
    // Predicated region
    $region2: #{_spatial_attention_impl.1} parent=1 // pred_check
      _
    $region3: #{_spatial_attention_impl.1} parent=1 // pred_check_branch
      %10 = sbr.rel (0) target = $region5
    $region4: #{_spatial_attention_impl.1} parent=1 // pred_region
      _
    $region5: #{_spatial_attention_impl.1} parent=1 // pred_fallthru
      _
    // Predicated region
    $region6: #{_spatial_attention_impl.1} parent=1 // pred_check
      _
    $region7: #{_spatial_attention_impl.1} parent=1 // pred_check_branch
      %12 = sbr.rel (0) target = $region9
    $region8: #{_spatial_attention_impl.1} parent=1 // pred_region
      _
    $region9: #{_spatial_attention_impl.1} parent=1 // pred_fallthru
      _
    // Predicated region
    $region10: #{_spatial_attention_impl.1} parent=1 // pred_check
      _
    $region11: #{_spatial_attention_impl.1} parent=1 // pred_check_branch
      %14 = sbr.rel (0) target = $region13
    $region12: #{_spatial_attention_impl.1} parent=1 // pred_region
      _
    $region13: #{_spatial_attention_impl.1} parent=1 // pred_fallthru
      _
    %v15 = vld [vmem:[%s0] sm:$0xff]
    %v16 = vld [vmem:[%s0 + $0x8] sm:$0xff]
    %v17 = vld [vmem:[%s0 + $0x10] sm:$0xff]
    %v18 = vld [vmem:[%s0 + $0x18] sm:$0xff]
    %v19 = vld [vmem:[%s1] sm:$0xff]
    %v20 = vld [vmem:[%s1 + $0x8] sm:$0xff]
    %v21 = vld [vmem:[%s1 + $0x10] sm:$0xff]
    %v22 = vld [vmem:[%s1 + $0x18] sm:$0xff]
    %vm23 = vcmask 261120
    %v25 = vsel %vm23, %v15, 0
    %v28 = vsel %vm23, %v16, 0
    %v31 = vsel %vm23, %v17, 0
    %v34 = vsel %vm23, %v18, 0
    %36 = vmatprep.subr.mxu0 0.0
    %37 = vmatpush1.msra.mxu0 0.0
    %38 = vmatprep.subr.mxu0 0.0
    %39 = vmatpush1.msra.mxu0 0.0
    %40 = vmatprep.subr.mxu0 0.0
    %41 = vmatpush1.msra.mxu0 0.0
    %42 = vmatprep.subr.mxu0 0.0
    %43 = vmatpush1.msra.mxu0 0.0
    %44 = vmatprep.subr.mxu0 0.0
    %45 = vmatpush1.msra.mxu0 0.0
    %46 = vmatprep.subr.mxu0 0.0
    %47 = vmatpush1.msra.mxu0 0.0
    %48 = vmatprep.subr.mxu0 0.0
    %49 = vmatpush1.msra.mxu0 0.0
    %50 = vmatprep.subr.mxu0 0.0
    %51 = vmatpush1.msra.mxu0 0.0
    %52 = vmatprep.subr.mxu0 0.0
    %53 = vmatpush1.msra.mxu0 0.0
    %54 = vmatprep.subr.mxu0 0.0
    %55 = vmatpush1.msra.mxu0 0.0
    %56 = vmatprep.subr.mxu0 0.0
    %57 = vmatpush1.msra.mxu0 0.0
    %58 = vmatprep.subr.mxu0 0.0
    %59 = vmatpush1.msra.mxu0 0.0
    %60 = vmatprep.subr.mxu0 0.0
    %61 = vmatpush1.msra.mxu0 %v22
    %62 = vmatprep.subr.mxu0 0.0
    %63 = vmatpush1.msra.mxu0 %v21
    %64 = vmatprep.subr.mxu0 0.0
    %65 = vmatpush1.msra.mxu0 %v20
    %66 = vmatprep.subr.mxu0 0.0
    %67 = vmatpush1.msra.mxu0 %v19
    %68 = vmatprep.subr.mxu0 0.0
    %69 = vmatpush2.msra.mxu0 0.0
    %70 = vmatprep.subr.mxu0 0.0
    %71 = vmatpush2.msra.mxu0 0.0
    %72 = vmatprep.subr.mxu0 0.0
    %73 = vmatpush2.msra.mxu0 0.0
    %74 = vmatprep.subr.mxu0 0.0
    %75 = vmatpush2.msra.mxu0 0.0
    %76 = vmatprep.subr.mxu0 0.0
    %77 = vmatpush2.msra.mxu0 0.0
    %78 = vmatprep.subr.mxu0 0.0
    %79 = vmatpush2.msra.mxu0 0.0
    %80 = vmatprep.subr.mxu0 0.0
    %81 = vmatpush2.msra.mxu0 0.0
    %82 = vmatprep.subr.mxu0 0.0
    %83 = vmatpush2.msra.mxu0 0.0
    %84 = vmatprep.subr.mxu0 0.0
    %85 = vmatpush2.msra.mxu0 0.0
    %86 = vmatprep.subr.mxu0 0.0
    %87 = vmatpush2.msra.mxu0 0.0
    %88 = vmatprep.subr.mxu0 0.0
    %89 = vmatpush2.msra.mxu0 0.0
    %90 = vmatprep.subr.mxu0 0.0
    %91 = vmatpush2.msra.mxu0 0.0
    %92 = vmatprep.subr.mxu0 0.0
    %93 = vmatpush2.msra.mxu0 0.0
    %94 = vmatprep.subr.mxu0 0.0
    %95 = vmatpush2.msra.mxu0 0.0
    %96 = vmatprep.subr.mxu0 0.0
    %97 = vmatpush2.msra.mxu0 0.0
    %98 = vmatprep.subr.mxu0 0.0
    %99 = vmatpush2.msra.mxu0 0.0
    %100 = vmatprep.mubr.f32.mxu0 0.0
    %101 = vmatmul.mubr.f32.gmra.mxu0 %v25
    %v102 = vpop.f32.mrf.mxu0
    %v103 = vadd.f32 0.0, %v102
    %v104 = vpop.f32.mrf.mxu0
    %105 = vmatprep.mubr.f32.mxu0 0.0
    %106 = vmatmul.mubr.f32.gmra.mxu0 %v28
    %v107 = vpop.f32.mrf.mxu0
    %v108 = vadd.f32 0.0, %v107
    %v109 = vpop.f32.mrf.mxu0
    %110 = vmatprep.mubr.f32.mxu0 0.0
    %111 = vmatmul.mubr.f32.gmra.mxu0 %v31
    %v112 = vpop.f32.mrf.mxu0
    %v113 = vadd.f32 0.0, %v112
    %v114 = vpop.f32.mrf.mxu0
    %115 = vmatprep.mubr.f32.mxu0 0.0
    %116 = vmatmul.mubr.f32.gmra.mxu0 %v34
    %v117 = vpop.f32.mrf.mxu0
    %v118 = vadd.f32 0.0, %v117
    %v119 = vpop.f32.mrf.mxu0
    %120 = vdwg.mxu0
    %v121 = vld [vmem:[%s2] sm:$0xff]
    %v122 = vld [vmem:[%s2 + $0x8] sm:$0xff]
    %s123 = scalar_lea.vmem %s2, 16
    %v124 = vld [vmem:[%s123] sm:$0xff]
    %v125 = vld [vmem:[%s123 + $0x8] sm:$0xff]
    %128 = vrot.lane.b32.xlu0 %v103, 120
    %v129 = vpop.permute.xlu0 %128
    %130 = vrot.lane.b32.xlu0 %v108, 120
    %v131 = vpop.permute.xlu0 %130
    %vm132 = vcmask 64512
    %v133 = vsel %vm132, %v103, 0
    %v135 = vsel %vm132, %v108, 0
    %v137 = vsel %vm132, %v129, 0
    %v139 = vsel %vm132, %v131, 0
    %141 = vmatprep.subr.mxu0 0.0
    %142 = vmatpush1.xpose.msra.mxu0 0.0
    %143 = vmatprep.subr.mxu0 0.0
    %144 = vmatpush1.xpose.msra.mxu0 0.0
    %145 = vmatprep.subr.mxu0 0.0
    %146 = vmatpush1.xpose.msra.mxu0 0.0
    %147 = vmatprep.subr.mxu0 0.0
    %148 = vmatpush1.xpose.msra.mxu0 0.0
    %149 = vmatprep.subr.mxu0 0.0
    %150 = vmatpush1.xpose.msra.mxu0 0.0
    %151 = vmatprep.subr.mxu0 0.0
    %152 = vmatpush1.xpose.msra.mxu0 0.0
    %153 = vmatprep.subr.mxu0 0.0
    %154 = vmatpush1.xpose.msra.mxu0 0.0
    %155 = vmatprep.subr.mxu0 0.0
    %156 = vmatpush1.xpose.msra.mxu0 0.0
    %157 = vmatprep.subr.mxu0 0.0
    %158 = vmatpush1.xpose.msra.mxu0 0.0
    %159 = vmatprep.subr.mxu0 0.0
    %160 = vmatpush1.xpose.msra.mxu0 0.0
    %161 = vmatprep.subr.mxu0 0.0
    %162 = vmatpush1.xpose.msra.mxu0 0.0
    %163 = vmatprep.subr.mxu0 0.0
    %164 = vmatpush1.xpose.msra.mxu0 0.0
    %165 = vmatprep.subr.mxu0 0.0
    %166 = vmatpush1.xpose.msra.mxu0 0.0
    %167 = vmatprep.subr.mxu0 0.0
    %168 = vmatpush1.xpose.msra.mxu0 0.0
    %169 = vmatprep.subr.mxu0 0.0
    %170 = vmatpush1.xpose.msra.mxu0 %v139
    %171 = vmatprep.subr.mxu0 0.0
    %172 = vmatpush1.xpose.msra.mxu0 %v137
    %173 = vmatprep.subr.mxu0 0.0
    %174 = vmatpush2.xpose.msra.mxu0 0.0
    %175 = vmatprep.subr.mxu0 0.0
    %176 = vmatpush2.xpose.msra.mxu0 0.0
    %177 = vmatprep.subr.mxu0 0.0
    %178 = vmatpush2.xpose.msra.mxu0 0.0
    %179 = vmatprep.subr.mxu0 0.0
    %180 = vmatpush2.xpose.msra.mxu0 0.0
    %181 = vmatprep.subr.mxu0 0.0
    %182 = vmatpush2.xpose.msra.mxu0 0.0
    %183 = vmatprep.subr.mxu0 0.0
    %184 = vmatpush2.xpose.msra.mxu0 0.0
    %185 = vmatprep.subr.mxu0 0.0
    %186 = vmatpush2.xpose.msra.mxu0 0.0
    %187 = vmatprep.subr.mxu0 0.0
    %188 = vmatpush2.xpose.msra.mxu0 0.0
    %189 = vmatprep.subr.mxu0 0.0
    %190 = vmatpush2.xpose.msra.mxu0 0.0
    %191 = vmatprep.subr.mxu0 0.0
    %192 = vmatpush2.xpose.msra.mxu0 0.0
    %193 = vmatprep.subr.mxu0 0.0
    %194 = vmatpush2.xpose.msra.mxu0 0.0
    %195 = vmatprep.subr.mxu0 0.0
    %196 = vmatpush2.xpose.msra.mxu0 0.0
    %197 = vmatprep.subr.mxu0 0.0
    %198 = vmatpush2.xpose.msra.mxu0 0.0
    %199 = vmatprep.subr.mxu0 0.0
    %200 = vmatpush2.xpose.msra.mxu0 0.0
    %201 = vmatprep.subr.mxu0 0.0
    %202 = vmatpush2.xpose.msra.mxu0 0.0
    %203 = vmatprep.subr.mxu0 0.0
    %204 = vmatpush2.xpose.msra.mxu0 0.0
    %205 = vmatprep.mubr.f32.mxu0 0.0
    %206 = vmatmul.mubr.f32.gmra.mxu0 %v133
    %v207 = vpop.f32.mrf.mxu0
    %v208 = vadd.f32 %v121, %v207
    %v209 = vpop.f32.mrf.mxu0
    %210 = vmatprep.mubr.f32.mxu0 0.0
    %211 = vmatmul.mubr.f32.gmra.mxu0 %v135
    %v212 = vpop.f32.mrf.mxu0
    %v213 = vadd.f32 %v122, %v212
    %v214 = vpop.f32.mrf.mxu0
    %215 = vdwg.mxu0
    %v216 = vxor.u32 %v208, 2147483648
    %v217 = vxor.u32 %v213, 2147483648
    %v218 = vmul.f32 %v216, 1.442695
    %v219 = vpow.pop %v218
    %v220 = vmul.f32 %v217, 1.442695
    %v221 = vpow.pop %v220
    %v222 = vadd.f32 %v219, 1.0
    %v223 = vadd.f32 %v221, 1.0
    %v224 = vrcp.pop %v222
    %v225 = vmul.f32 1.0, %v224
    %v226 = vrcp.pop %v223
    %v227 = vmul.f32 1.0, %v226
    %230 = vrot.lane.b32.xlu0 %v113, 120
    %v231 = vpop.permute.xlu0 %230
    %232 = vrot.lane.b32.xlu0 %v118, 120
    %v233 = vpop.permute.xlu0 %232
    %v234 = vsel %vm132, %v113, 0
    %v236 = vsel %vm132, %v118, 0
    %v238 = vsel %vm132, %v231, 0
    %v240 = vsel %vm132, %v233, 0
    %242 = vmatprep.subr.mxu0 0.0
    %243 = vmatpush1.xpose.msra.mxu0 0.0
    %244 = vmatprep.subr.mxu0 0.0
    %245 = vmatpush1.xpose.msra.mxu0 0.0
    %246 = vmatprep.subr.mxu0 0.0
    %247 = vmatpush1.xpose.msra.mxu0 0.0
    %248 = vmatprep.subr.mxu0 0.0
    %249 = vmatpush1.xpose.msra.mxu0 0.0
    %250 = vmatprep.subr.mxu0 0.0
    %251 = vmatpush1.xpose.msra.mxu0 0.0
    %252 = vmatprep.subr.mxu0 0.0
    %253 = vmatpush1.xpose.msra.mxu0 0.0
    %254 = vmatprep.subr.mxu0 0.0
    %255 = vmatpush1.xpose.msra.mxu0 0.0
    %256 = vmatprep.subr.mxu0 0.0
    %257 = vmatpush1.xpose.msra.mxu0 0.0
    %258 = vmatprep.subr.mxu0 0.0
    %259 = vmatpush1.xpose.msra.mxu0 0.0
    %260 = vmatprep.subr.mxu0 0.0
    %261 = vmatpush1.xpose.msra.mxu0 0.0
    %262 = vmatprep.subr.mxu0 0.0
    %263 = vmatpush1.xpose.msra.mxu0 0.0
    %264 = vmatprep.subr.mxu0 0.0
    %265 = vmatpush1.xpose.msra.mxu0 0.0
    %266 = vmatprep.subr.mxu0 0.0
    %267 = vmatpush1.xpose.msra.mxu0 0.0
    %268 = vmatprep.subr.mxu0 0.0
    %269 = vmatpush1.xpose.msra.mxu0 0.0
    %270 = vmatprep.subr.mxu0 0.0
    %271 = vmatpush1.xpose.msra.mxu0 %v240
    %272 = vmatprep.subr.mxu0 0.0
    %273 = vmatpush1.xpose.msra.mxu0 %v238
    %274 = vmatprep.subr.mxu0 0.0
    %275 = vmatpush2.xpose.msra.mxu0 0.0
    %276 = vmatprep.subr.mxu0 0.0
    %277 = vmatpush2.xpose.msra.mxu0 0.0
    %278 = vmatprep.subr.mxu0 0.0
    %279 = vmatpush2.xpose.msra.mxu0 0.0
    %280 = vmatprep.subr.mxu0 0.0
    %281 = vmatpush2.xpose.msra.mxu0 0.0
    %282 = vmatprep.subr.mxu0 0.0
    %283 = vmatpush2.xpose.msra.mxu0 0.0
    %284 = vmatprep.subr.mxu0 0.0
    %285 = vmatpush2.xpose.msra.mxu0 0.0
    %286 = vmatprep.subr.mxu0 0.0
    %287 = vmatpush2.xpose.msra.mxu0 0.0
    %288 = vmatprep.subr.mxu0 0.0
    %289 = vmatpush2.xpose.msra.mxu0 0.0
    %290 = vmatprep.subr.mxu0 0.0
    %291 = vmatpush2.xpose.msra.mxu0 0.0
    %292 = vmatprep.subr.mxu0 0.0
    %293 = vmatpush2.xpose.msra.mxu0 0.0
    %294 = vmatprep.subr.mxu0 0.0
    %295 = vmatpush2.xpose.msra.mxu0 0.0
    %296 = vmatprep.subr.mxu0 0.0
    %297 = vmatpush2.xpose.msra.mxu0 0.0
    %298 = vmatprep.subr.mxu0 0.0
    %299 = vmatpush2.xpose.msra.mxu0 0.0
    %300 = vmatprep.subr.mxu0 0.0
    %301 = vmatpush2.xpose.msra.mxu0 0.0
    %302 = vmatprep.subr.mxu0 0.0
    %303 = vmatpush2.xpose.msra.mxu0 0.0
    %304 = vmatprep.subr.mxu0 0.0
    %305 = vmatpush2.xpose.msra.mxu0 0.0
    %306 = vmatprep.mubr.f32.mxu0 0.0
    %307 = vmatmul.mubr.f32.gmra.mxu0 %v234
    %v308 = vpop.f32.mrf.mxu0
    %v309 = vadd.f32 %v121, %v308
    %v310 = vpop.f32.mrf.mxu0
    %311 = vmatprep.mubr.f32.mxu0 0.0
    %312 = vmatmul.mubr.f32.gmra.mxu0 %v236
    %v313 = vpop.f32.mrf.mxu0
    %v314 = vadd.f32 %v122, %v313
    %v315 = vpop.f32.mrf.mxu0
    %316 = vdwg.mxu0
    %v317 = vxor.u32 %v309, 2147483648
    %v318 = vxor.u32 %v314, 2147483648
    %v319 = vmul.f32 %v317, 1.442695
    %v320 = vpow.pop %v319
    %v321 = vmul.f32 %v318, 1.442695
    %v322 = vpow.pop %v321
    %v323 = vadd.f32 %v320, 1.0
    %v324 = vadd.f32 %v322, 1.0
    %v325 = vrcp.pop %v323
    %v326 = vmul.f32 1.0, %v325
    %v327 = vrcp.pop %v324
    %v328 = vmul.f32 1.0, %v327
    %331 = vrot.lane.b32.xlu0 %v326, 16
    %v332 = vpop.permute.xlu0 %331
    %333 = vrot.lane.b32.xlu0 %v328, 16
    %v334 = vpop.permute.xlu0 %333
    %vm337 = vcmask 130048
    %v338 = vsel %vm337, %v225, %v332
    %v339 = vsel %vm337, %v227, %v334
    %v341 = vsel %vm337, %v124, 0
    %v344 = vsel %vm337, %v125, 0
    %346 = vmatprep.subr.mxu0 0.0
    %347 = vmatpush1.msra.mxu0 0.0
    %348 = vmatprep.subr.mxu0 0.0
    %349 = vmatpush1.msra.mxu0 0.0
    %350 = vmatprep.subr.mxu0 0.0
    %351 = vmatpush1.msra.mxu0 0.0
    %352 = vmatprep.subr.mxu0 0.0
    %353 = vmatpush1.msra.mxu0 0.0
    %354 = vmatprep.subr.mxu0 0.0
    %355 = vmatpush1.msra.mxu0 0.0
    %356 = vmatprep.subr.mxu0 0.0
    %357 = vmatpush1.msra.mxu0 0.0
    %358 = vmatprep.subr.mxu0 0.0
    %359 = vmatpush1.msra.mxu0 0.0
    %360 = vmatprep.subr.mxu0 0.0
    %361 = vmatpush1.msra.mxu0 0.0
    %362 = vmatprep.subr.mxu0 0.0
    %363 = vmatpush1.msra.mxu0 0.0
    %364 = vmatprep.subr.mxu0 0.0
    %365 = vmatpush1.msra.mxu0 0.0
    %366 = vmatprep.subr.mxu0 0.0
    %367 = vmatpush1.msra.mxu0 0.0
    %368 = vmatprep.subr.mxu0 0.0
    %369 = vmatpush1.msra.mxu0 0.0
    %370 = vmatprep.subr.mxu0 0.0
    %371 = vmatpush1.msra.mxu0 0.0
    %372 = vmatprep.subr.mxu0 0.0
    %373 = vmatpush1.msra.mxu0 0.0
    %374 = vmatprep.subr.mxu0 0.0
    %375 = vmatpush1.msra.mxu0 %v339
    %376 = vmatprep.subr.mxu0 0.0
    %377 = vmatpush1.msra.mxu0 %v338
    %378 = vmatprep.subr.mxu0 0.0
    %379 = vmatpush2.msra.mxu0 0.0
    %380 = vmatprep.subr.mxu0 0.0
    %381 = vmatpush2.msra.mxu0 0.0
    %382 = vmatprep.subr.mxu0 0.0
    %383 = vmatpush2.msra.mxu0 0.0
    %384 = vmatprep.subr.mxu0 0.0
    %385 = vmatpush2.msra.mxu0 0.0
    %386 = vmatprep.subr.mxu0 0.0
    %387 = vmatpush2.msra.mxu0 0.0
    %388 = vmatprep.subr.mxu0 0.0
    %389 = vmatpush2.msra.mxu0 0.0
    %390 = vmatprep.subr.mxu0 0.0
    %391 = vmatpush2.msra.mxu0 0.0
    %392 = vmatprep.subr.mxu0 0.0
    %393 = vmatpush2.msra.mxu0 0.0
    %394 = vmatprep.subr.mxu0 0.0
    %395 = vmatpush2.msra.mxu0 0.0
    %396 = vmatprep.subr.mxu0 0.0
    %397 = vmatpush2.msra.mxu0 0.0
    %398 = vmatprep.subr.mxu0 0.0
    %399 = vmatpush2.msra.mxu0 0.0
    %400 = vmatprep.subr.mxu0 0.0
    %401 = vmatpush2.msra.mxu0 0.0
    %402 = vmatprep.subr.mxu0 0.0
    %403 = vmatpush2.msra.mxu0 0.0
    %404 = vmatprep.subr.mxu0 0.0
    %405 = vmatpush2.msra.mxu0 0.0
    %406 = vmatprep.subr.mxu0 0.0
    %407 = vmatpush2.msra.mxu0 0.0
    %408 = vmatprep.subr.mxu0 0.0
    %409 = vmatpush2.msra.mxu0 0.0
    %410 = vmatprep.mubr.f32.mxu0 0.0
    %411 = vmatmul.mubr.f32.gmra.mxu0 %v341
    %v412 = vpop.f32.mrf.mxu0
    %v413 = vadd.f32 0.0, %v412
    %v414 = vpop.f32.mrf.mxu0
    %415 = vmatprep.mubr.f32.mxu0 0.0
    %416 = vmatmul.mubr.f32.gmra.mxu0 %v344
    %v417 = vpop.f32.mrf.mxu0
    %v418 = vadd.f32 0.0, %v417
    %v419 = vpop.f32.mrf.mxu0
    %420 = vdwg.mxu0
    %v421 = vsel %vm23, %v413, -inf
    %v422 = vsel %vm23, %v418, -inf
    %v423 = vmax.f32 %v421, %v422
    %v424 = vrot.slane %v423, 4
    %v425 = vmax.f32 %v423, %v424
    %v426 = vrot.slane %v425, 2
    %v427 = vmax.f32 %v425, %v426
    %v428 = vrot.slane %v427, 1
    %v429 = vmax.f32 %v427, %v428
    %v430 = vsub.f32 %v413, %v429
    %v431 = vsub.f32 %v418, %v429
    %v432 = vmul.f32 %v430, 1.442695
    %v433 = vpow.pop %v432
    %v434 = vmul.f32 %v431, 1.442695
    %v435 = vpow.pop %v434
    %v436 = vsel %vm23, %v433, 0.0
    %v437 = vsel %vm23, %v435, 0.0
    %v438 = vadd.f32 %v436, %v437
    %v439 = vrot.slane %v438, 4
    %v440 = vadd.f32 %v438, %v439
    %v441 = vrot.slane %v440, 2
    %v442 = vadd.f32 %v440, %v441
    %v443 = vrot.slane %v442, 1
    %v444 = vadd.f32 %v442, %v443
    %v445 = vrcp.pop %v444
    %v446 = vmul.f32 %v433, %v445
    %v447 = vmul.f32 %v435, %v445
    %448 = vst.msk [vmem:[#allocation2] sm:$0xff] %vm337, %v446
    %449 = vst.msk [vmem:[#allocation2 + $0x8] sm:$0xff] %vm337, %v447
    %452 = vrot.lane.b32.xlu0 %v446, 112
    %v453 = vpop.permute.xlu0 %452
    %454 = vrot.lane.b32.xlu0 %v447, 112
    %v455 = vpop.permute.xlu0 %454
    %s458 = scalar_lea.vmem [#allocation2], 16
    %459 = vst.msk [vmem:[%s458] sm:$0xff] %vm337, %v453
    %460 = vst.msk [vmem:[%s458 + $0x8] sm:$0xff] %vm337, %v455
    // Predicated region
    $region14: #{_spatial_attention_impl.1} parent=1 // pred_check
      _
    $region15: #{_spatial_attention_impl.1} parent=1 // pred_check_branch
      %462 = sbr.rel (0) target = $region17
    $region16: #{_spatial_attention_impl.1} parent=1 // pred_region
      %s464 = ssub.s32 512, 512
      %465 = vsyncadd [#allocation3], %s464
      %s466 = sshll.u32 [#allocation2], 4
      %s467 = int_to_ptr.vmem [resolvable:$true] %s466
      %472 = dma.vmem_to_hbm [thread:$0]  %s467, 512, %s3, [#allocation3], 128, 128, 8
    $region17: #{_spatial_attention_impl.1} parent=1 // pred_fallthru
      _
    // Predicated region
    $region18: #{_spatial_attention_impl.1} parent=1 // pred_check
      _
    $region19: #{_spatial_attention_impl.1} parent=1 // pred_check_branch
      %474 = sbr.rel (0) target = $region21
    $region20: #{_spatial_attention_impl.1} parent=1 // pred_region
      %475 = dma.done [#allocation3], 512
    $region21: #{_spatial_attention_impl.1} parent=1 // pred_fallthru
      _
    %476 = vsyncpa [#allocation3], 1

</llo_original>
